<compile_context>
chip_gen: v6e
topology: v6e:2x2x1
jax: 0.10.0
libtpu: 0.0.40
codegen_flags: <defaults>
</compile_context>

<pallas_src>
import jax
import jax.numpy as jnp
from jax import lax
from jax.experimental import pallas as pl
from jax.experimental.pallas import tpu as pltpu


def _round_up(x, m):
    return ((x + m - 1) // m) * m


def _act(h, name):
    if name == "ReLU":
        return jnp.maximum(h, 0.0)
    if name == "Tanh":
        return jnp.tanh(h)
    if name == "Sigmoid":
        return jax.nn.sigmoid(h)
    raise ValueError(f"unsupported activation {name}")


# Slots (leading axis) in the packed parameter slab.
_W1, _B1, _W2, _B2, _W3, _B3, _W4T, _B4 = range(8)


def make_mlp_kernel(activation, dims):
    n_in, n_h1, n_h2, n_h3, n_out = dims

    def mlp_kernel(xT_ref, p_ref, oT_ref):
        x = xT_ref[...]                            # (N_in, TB), batch on lanes

        # Static slices of the single resident parameter slab.
        w1 = p_ref[_W1, :n_h1, :n_in]
        b1 = p_ref[_B1, :n_h1, :1]
        w2 = p_ref[_W2, :n_h2, :n_h1]
        b2 = p_ref[_B2, :n_h2, :1]
        w3 = p_ref[_W3, :n_h3, :n_h2]
        b3 = p_ref[_B3, :n_h3, :1]
        w4t = p_ref[_W4T, :n_h3, :n_out]
        b4 = p_ref[_B4, :n_out, :1]

        # --- Layer 1: Linear + (Dropout p=0 == identity) + act --------------
        if n_in == 1:
            # K=1 contraction == outer product -> VPU broadcast multiply.
            h = w1 * x + b1                        # (N_h1,1)*(1,TB)+(N_h1,1)
        else:
            h = jnp.dot(w1, x, preferred_element_type=jnp.float32) + b1
        h = _act(h, activation)

        # --- Layers 2 & 3: square hidden matmuls (MXU) -----------------------
        h = _act(jnp.dot(w2, h, preferred_element_type=jnp.float32) + b2,
                 activation)
        h = _act(jnp.dot(w3, h, preferred_element_type=jnp.float32) + b3,
                 activation)

        # --- Output layer (no activation) ------------------------------------
        if n_out == 1:
            # N=1 contraction == weighted sublane reduce; keeps the MXU idle.
            out = jnp.sum(w4t * h, axis=0, keepdims=True) + b4
        else:
            # Contract over the feature axis (axis 0 of both w4^T and h).
            out = lax.dot_general(w4t, h, (((0,), (0,)), ((), ())),
                                  preferred_element_type=jnp.float32) + b4
        oT_ref[...] = out.astype(oT_ref.dtype)

    return mlp_kernel


def pack_reg_model_params(weights):
    """Pack w1..w4 / b1..b4 (PyTorch layout) into one zero-padded f32 slab.

    Slab shape (8, R_pad, C_pad); slot k holds its parameter at [:rows, :cols].
    w4 is stored transposed (N_h3, N_out) so every piece is (features, *).
    """
    pieces = [
        weights["w1"], weights["b1"].reshape(-1, 1),
        weights["w2"], weights["b2"].reshape(-1, 1),
        weights["w3"], weights["b3"].reshape(-1, 1),
        weights["w4"].T, weights["b4"].reshape(-1, 1),
    ]
    r_pad = _round_up(max(p.shape[0] for p in pieces), 8)
    c_pad = _round_up(max(p.shape[1] for p in pieces), 128)
    slab = jnp.zeros((len(pieces), r_pad, c_pad), jnp.float32)
    for k, p in enumerate(pieces):
        slab = slab.at[k, :p.shape[0], :p.shape[1]].set(p.astype(jnp.float32))
    return slab


def reg_model_forward(x, params_dict, weights, *, tb=512):
    """Forward pass of reg_model.

    x       : (B, N_in) float32
    weights : dict of PyTorch-layout tensors: w{i} (out,in), b{i} (out,)
    Returns : (B, N_out) float32
    """
    # Dropout(p=0) is an exact identity -> matches PyTorch in train AND eval.
    assert float(params_dict["dropout"]) == 0.0, (
        "kernel implements p=0 dropout (identity) only; p>0 train-mode "
        "dropout is not supported")

    B, N_in = x.shape
    N_out = weights["w4"].shape[0]
    dims = (N_in, params_dict["N_h1"], params_dict["N_h2"],
            params_dict["N_h3"], N_out)

    # ---- batch tiling: batch lives on the LANE axis -------------------------
    B_pad = _round_up(max(B, 1), 128)
    TB = max(128, min(_round_up(tb, 128), B_pad))
    if B_pad // TB < 2:
        # v7x megacore: prefer >= 2 'parallel' grid steps so both TensorCores
        # get a share of the batch (no effect on single-core v5e/v6e).
        TB = max(128, _round_up(B_pad // 2, 128))
    B_pad = _round_up(B_pad, TB)

    # (N_in, B) with batch on lanes.  For N_in == 1 this is a free reshape.
    xT = x.reshape(1, B) if N_in == 1 else x.T
    if B_pad != B:
        # Single fused pad op; skipped entirely when B is already TB-aligned,
        # so no extra HBM pass over x in the large aligned-batch regime.
        xT = jnp.pad(xT, ((0, 0), (0, B_pad - B)))

    # One packed parameter slab (O(model size) ~ a few KiB; hoist/cache this
    # outside the call if invoking the forward repeatedly).
    slab = pack_reg_model_params(weights)

    kernel = make_mlp_kernel(params_dict["activation"], dims)

    grid = (B_pad // TB,)
    # x / out tiles stream along the batch grid; the parameter slab uses a
    # constant index_map so it is DMA'd once and stays resident in VMEM.
    # (pl.Buffered(1) on the slab would drop its second buffer, but the waste
    #  is only ~the slab size, so we keep default pipelining for robustness.)
    in_specs = [
        pl.BlockSpec((N_in, TB), lambda i: (0, i)),
        pl.BlockSpec(slab.shape, lambda i: (0, 0, 0)),
    ]
    out_specs = pl.BlockSpec((N_out, TB), lambda i: (0, i))

    outT = pl.pallas_call(
        kernel,
        out_shape=jax.ShapeDtypeStruct((N_out, B_pad), jnp.float32),
        grid=grid,
        in_specs=in_specs,
        out_specs=out_specs,
        compiler_params=pltpu.CompilerParams(
            dimension_semantics=("parallel",)),   # megacore-shardable on v7x
    )(xT, slab)

    return outT[:, :B].T


def xavier_uniform(key, shape, fan_in, fan_out):
    # Matches torch.nn.init.xavier_uniform_ (gain=1).
    bound = (6.0 / (fan_in + fan_out)) ** 0.5
    return jax.random.uniform(key, shape, jnp.float32, minval=-bound, maxval=bound)


def init_reg_model_weights(key, N_in, params_dict, N_out):
    """PyTorch-layout weights: w{i}: (out, in) xavier_uniform, b{i}: (out,) zeros."""
    dims = [N_in, params_dict["N_h1"], params_dict["N_h2"],
            params_dict["N_h3"], N_out]
    keys = jax.random.split(key, 4)
    w = {}
    for i in range(4):
        fan_in, fan_out = dims[i], dims[i + 1]
        w[f"w{i+1}"] = xavier_uniform(keys[i], (fan_out, fan_in), fan_in, fan_out)
        w[f"b{i+1}"] = jnp.zeros((fan_out,), jnp.float32)
    return w


if __name__ == "__main__":
    # Hyperparameters (the `params` dict of reg_model).
    params_dict = {
        "N_h1": 32,
        "N_h2": 32,
        "N_h3": 32,
        "dropout": 0.0,       # identity dropout -> exact deterministic forward
        "activation": "ReLU",
    }
    N_in, N_out = 1, 1        # regression: scalar in, scalar out
    B = 8                     # small batch

    key = jax.random.PRNGKey(0)
    k_w, k_x = jax.random.split(key)

    weights = init_reg_model_weights(k_w, N_in, params_dict, N_out)
    x = jax.random.normal(k_x, (B, N_in), jnp.float32)

    out = reg_model_forward(x, params_dict, weights)
    out = jax.block_until_ready(out)

    # Pure-JAX reference of the same forward (PyTorch layout: act(h @ W.T + b)).
    h = x
    for i in range(1, 4):
        h = jnp.maximum(h @ weights[f"w{i}"].T + weights[f"b{i}"], 0.0)
    ref = h @ weights["w4"].T + weights["b4"]

    assert out.shape == (B, N_out)
    assert jnp.allclose(out, ref, atol=1e-5, rtol=1e-5), (
        float(jnp.max(jnp.abs(out - ref))))

    print("KERNEL_OK")
</pallas_src>

<mosaic_0001>
module attributes {stable_mosaic.version = 11 : i64} {
  func.func @mlp_kernel(%arg0: i32, %arg1: memref<1x128xf32, #tpu.memory_space<vmem>>, %arg2: memref<8x32x128xf32, #tpu.memory_space<vmem>>, %arg3: memref<1x128xf32, #tpu.memory_space<vmem>>) attributes {dimension_semantics = [#tpu.dimension_semantics<parallel>], iteration_bounds = array<i64: 1>, scalar_prefetch = 0 : i64, scratch_operands = 0 : i64, tpu.core_type = #tpu.core_type<tc>, window_params = [{transform_indices = @transform_0, window_bounds = array<i64: 1, 128>}, {pipeline_mode = #tpu.pipeline_mode<synchronous>, transform_indices = @transform_1, window_bounds = array<i64: 8, 32, 128>}, {transform_indices = @transform_2, window_bounds = array<i64: 1, 128>}]} {
    %c0 = arith.constant 0 : index
    %c0_0 = arith.constant 0 : index
    %0 = vector.load %arg1[%c0, %c0_0] : memref<1x128xf32, #tpu.memory_space<vmem>>, vector<1x128xf32>
    %c0_1 = arith.constant 0 : index
    %c0_2 = arith.constant 0 : index
    %c0_3 = arith.constant 0 : index
    %1 = vector.load %arg2[%c0_1, %c0_2, %c0_3] : memref<8x32x128xf32, #tpu.memory_space<vmem>>, vector<1x32x1xf32>
    %2 = vector.shape_cast %1 : vector<1x32x1xf32> to vector<32x1xf32>
    %c1 = arith.constant 1 : index
    %c0_4 = arith.constant 0 : index
    %c0_5 = arith.constant 0 : index
    %3 = vector.load %arg2[%c1, %c0_4, %c0_5] : memref<8x32x128xf32, #tpu.memory_space<vmem>>, vector<1x32x1xf32>
    %4 = vector.shape_cast %3 : vector<1x32x1xf32> to vector<32x1xf32>
    %c2 = arith.constant 2 : index
    %c0_6 = arith.constant 0 : index
    %c0_7 = arith.constant 0 : index
    %5 = vector.load %arg2[%c2, %c0_6, %c0_7] : memref<8x32x128xf32, #tpu.memory_space<vmem>>, vector<1x32x32xf32>
    %6 = vector.shape_cast %5 : vector<1x32x32xf32> to vector<32x32xf32>
    %c3 = arith.constant 3 : index
    %c0_8 = arith.constant 0 : index
    %c0_9 = arith.constant 0 : index
    %7 = vector.load %arg2[%c3, %c0_8, %c0_9] : memref<8x32x128xf32, #tpu.memory_space<vmem>>, vector<1x32x1xf32>
    %8 = vector.shape_cast %7 : vector<1x32x1xf32> to vector<32x1xf32>
    %c4 = arith.constant 4 : index
    %c0_10 = arith.constant 0 : index
    %c0_11 = arith.constant 0 : index
    %9 = vector.load %arg2[%c4, %c0_10, %c0_11] : memref<8x32x128xf32, #tpu.memory_space<vmem>>, vector<1x32x32xf32>
    %10 = vector.shape_cast %9 : vector<1x32x32xf32> to vector<32x32xf32>
    %c5 = arith.constant 5 : index
    %c0_12 = arith.constant 0 : index
    %c0_13 = arith.constant 0 : index
    %11 = vector.load %arg2[%c5, %c0_12, %c0_13] : memref<8x32x128xf32, #tpu.memory_space<vmem>>, vector<1x32x1xf32>
    %12 = vector.shape_cast %11 : vector<1x32x1xf32> to vector<32x1xf32>
    %c6 = arith.constant 6 : index
    %c0_14 = arith.constant 0 : index
    %c0_15 = arith.constant 0 : index
    %13 = vector.load %arg2[%c6, %c0_14, %c0_15] : memref<8x32x128xf32, #tpu.memory_space<vmem>>, vector<1x32x1xf32>
    %14 = vector.shape_cast %13 : vector<1x32x1xf32> to vector<32x1xf32>
    %c7 = arith.constant 7 : index
    %c0_16 = arith.constant 0 : index
    %c0_17 = arith.constant 0 : index
    %15 = vector.load %arg2[%c7, %c0_16, %c0_17] : memref<8x32x128xf32, #tpu.memory_space<vmem>>, vector<1x1x1xf32>
    %16 = vector.shape_cast %15 : vector<1x1x1xf32> to vector<1x1xf32>
    %17 = vector.broadcast %2 : vector<32x1xf32> to vector<32x128xf32>
    %18 = vector.broadcast %0 : vector<1x128xf32> to vector<32x128xf32>
    %19 = arith.mulf %17, %18 : vector<32x128xf32>
    %20 = vector.broadcast %4 : vector<32x1xf32> to vector<32x128xf32>
    %21 = arith.addf %19, %20 : vector<32x128xf32>
    %cst = arith.constant 0.000000e+00 : f32
    %22 = vector.broadcast %cst : f32 to vector<32x128xf32>
    %23 = arith.maximumf %21, %22 : vector<32x128xf32>
    %cst_18 = arith.constant dense<0.000000e+00> : vector<32x128xf32>
    %24 = tpu.matmul %6, %23, %cst_18 {dimension_numbers = #tpu.dot_dimension_numbers<[1], [0], [0], [1], [0, 0, 1, 1], [], []>} : vector<32x32xf32>, vector<32x128xf32>, vector<32x128xf32> -> vector<32x128xf32>
    %25 = vector.broadcast %8 : vector<32x1xf32> to vector<32x128xf32>
    %26 = arith.addf %24, %25 : vector<32x128xf32>
    %cst_19 = arith.constant 0.000000e+00 : f32
    %27 = vector.broadcast %cst_19 : f32 to vector<32x128xf32>
    %28 = arith.maximumf %26, %27 : vector<32x128xf32>
    %cst_20 = arith.constant dense<0.000000e+00> : vector<32x128xf32>
    %29 = tpu.matmul %10, %28, %cst_20 {dimension_numbers = #tpu.dot_dimension_numbers<[1], [0], [0], [1], [0, 0, 1, 1], [], []>} : vector<32x32xf32>, vector<32x128xf32>, vector<32x128xf32> -> vector<32x128xf32>
    %30 = vector.broadcast %12 : vector<32x1xf32> to vector<32x128xf32>
    %31 = arith.addf %29, %30 : vector<32x128xf32>
    %cst_21 = arith.constant 0.000000e+00 : f32
    %32 = vector.broadcast %cst_21 : f32 to vector<32x128xf32>
    %33 = arith.maximumf %31, %32 : vector<32x128xf32>
    %34 = vector.broadcast %14 : vector<32x1xf32> to vector<32x128xf32>
    %35 = arith.mulf %34, %33 : vector<32x128xf32>
    %cst_22 = arith.constant dense<0.000000e+00> : vector<128xf32>
    %36 = vector.multi_reduction <add>, %35, %cst_22 [0] : vector<32x128xf32> to vector<128xf32>
    %37 = vector.shape_cast %36 : vector<128xf32> to vector<1x128xf32>
    %38 = vector.broadcast %16 : vector<1x1xf32> to vector<1x128xf32>
    %39 = arith.addf %37, %38 : vector<1x128xf32>
    %c0_23 = arith.constant 0 : index
    %c0_24 = arith.constant 0 : index
    %40 = vector.load %arg3[%c0_23, %c0_24] : memref<1x128xf32, #tpu.memory_space<vmem>>, vector<1x128xf32>
    tpu.vector_store %arg3[%c0_23, %c0_24], %39 {strides = array<i32>} : memref<1x128xf32, #tpu.memory_space<vmem>>, vector<1x128xf32>,
    return
  }
  func.func @transform_0(%arg0: i32) -> (i32, i32) {
    %c0_i32 = arith.constant 0 : i32
    %c0_i32_0 = arith.constant 0 : i32
    return %c0_i32, %arg0 : i32, i32
  }
  func.func @transform_1(%arg0: i32) -> (i32, i32, i32) {
    %c0_i32 = arith.constant 0 : i32
    %c0_i32_0 = arith.constant 0 : i32
    %c0_i32_1 = arith.constant 0 : i32
    %c0_i32_2 = arith.constant 0 : i32
    return %c0_i32, %c0_i32_0, %c0_i32_1 : i32, i32, i32
  }
  func.func @transform_2(%arg0: i32) -> (i32, i32) {
    %c0_i32 = arith.constant 0 : i32
    %c0_i32_0 = arith.constant 0 : i32
    return %c0_i32, %arg0 : i32, i32
  }
}

</mosaic_0001>

<llo_original>
// kernel: tpu_custom_call.1
$region0: #{tpu_custom_call.1}
  #allocation0 [shape = 'u32[]', space=smem, size = 0x4, offset = 0x4, fixed_abs, tag = 'smem constant byte address 0x4 - core index']
  #allocation1 [shape = 'u32[144,128]{1,0:T(1,128)}', space=vmem, size = 0x12000, scoped, tag = 'internal scratch']
  %s0 = inlined_call_operand.hbm [shape: f32[1,128], index: 0, kind: input, shape index: {}]
  %s1 = inlined_call_operand.hbm [shape: f32[8,32,128], index: 1, kind: input, shape index: {}]
  %s2 = inlined_call_operand.hbm [shape: f32[1,128], index: 2, kind: output, shape index: {}]
  %s3 = sld [smem:[#allocation0]]
  $region26: #{tpu_custom_call.1} parent=0
    _
  %s5 = ssub.s32 1, %s3
  %s6 = scalar_select 0, %s5, %s3
  $region1: #{tpu_custom_call.1} parent=0
    #allocation2 [shape = 'u8[512]{0}', space=vmem, size = 0x400, scoped, tag = 'input window, operand 0, single buffered']
    #allocation3 [shape = 's32[1]{0}', space=sflag, size = 0x4, scoped, tag = 'scoped memory for tpu_custom_call.1']
    #allocation4 [shape = 's32[1]{0}', space=sflag, size = 0x4, scoped, tag = 'scoped memory for tpu_custom_call.1']
    #allocation5 [shape = 'u8[131072]{0}', space=vmem, size = 0x20000, scoped, tag = 'input window, operand 1, single buffered']
    #allocation6 [shape = 's32[1]{0}', space=sflag, size = 0x4, scoped, tag = 'scoped memory for tpu_custom_call.1']
    #allocation7 [shape = 'u8[512]{0}', space=vmem, size = 0x400, scoped, tag = 'output window, operand 0, single buffered']
    %7 = vsyncpa [#allocation3], 0
    %8 = vsyncpa [#allocation6], 0
    %9 = vsyncpa [#allocation4], 0
    // Predicated region
    $region2: #{tpu_custom_call.1} parent=1 // pred_check
      _
    $region3: #{tpu_custom_call.1} parent=1 // pred_check_branch
      %11 = sbr.rel (0) target = $region5
    $region4: #{tpu_custom_call.1} parent=1 // pred_region
      %s13 = ssub.s32 16, 16
      %14 = vsyncadd [#allocation3], %s13
      %s16 = sshll.u32 [#allocation2], 4
      %s17 = int_to_ptr.vmem [resolvable:$true] %s16
      %19 = dma.hbm_to_vmem [thread:$0]  %s0, 16, %s17, [#allocation3]
    $region5: #{tpu_custom_call.1} parent=1 // pred_fallthru
      _
    // Predicated region
    $region6: #{tpu_custom_call.1} parent=1 // pred_check
      _
    $region7: #{tpu_custom_call.1} parent=1 // pred_check_branch
      %21 = sbr.rel (0) target = $region9
    $region8: #{tpu_custom_call.1} parent=1 // pred_region
      %s23 = ssub.s32 4096, 4096
      %24 = vsyncadd [#allocation6], %s23
      %s25 = sshll.u32 [#allocation5], 4
      %s26 = int_to_ptr.vmem [resolvable:$true] %s25
      %31 = dma.hbm_to_vmem [thread:$0]  %s1, 4096, %s26, [#allocation6], 128, 128, 8
    $region9: #{tpu_custom_call.1} parent=1 // pred_fallthru
      _
    // Predicated region
    $region10: #{tpu_custom_call.1} parent=1 // pred_check
      _
    $region11: #{tpu_custom_call.1} parent=1 // pred_check_branch
      %33 = sbr.rel (0) target = $region13
    $region12: #{tpu_custom_call.1} parent=1 // pred_region
      %34 = dma.done [#allocation3], 16
    $region13: #{tpu_custom_call.1} parent=1 // pred_fallthru
      _
    // Predicated region
    $region14: #{tpu_custom_call.1} parent=1 // pred_check
      _
    $region15: #{tpu_custom_call.1} parent=1 // pred_check_branch
      %36 = sbr.rel (0) target = $region17
    $region16: #{tpu_custom_call.1} parent=1 // pred_region
      %37 = dma.done [#allocation6], 4096
    $region17: #{tpu_custom_call.1} parent=1 // pred_fallthru
      _
    %v38 = vld [vmem:[#allocation2] sm:$0x1]
    %v39 = vld [vmem:[#allocation5] sm:$0xff]
    %v40 = vld [vmem:[#allocation5 + $0x8] sm:$0xff]
    %v41 = vld [vmem:[#allocation5 + $0x10] sm:$0xff]
    %v42 = vld [vmem:[#allocation5 + $0x18] sm:$0xff]
    %s43 = scalar_lea.vmem [#allocation5], 32
    %v44 = vld [vmem:[%s43] sm:$0xff]
    %v45 = vld [vmem:[%s43 + $0x8] sm:$0xff]
    %v46 = vld [vmem:[%s43 + $0x10] sm:$0xff]
    %v47 = vld [vmem:[%s43 + $0x18] sm:$0xff]
    %s48 = scalar_lea.vmem [#allocation5], 64
    %v49 = vld [vmem:[%s48] sm:$0xff]
    %v50 = vld [vmem:[%s48 + $0x8] sm:$0xff]
    %v51 = vld [vmem:[%s48 + $0x10] sm:$0xff]
    %v52 = vld [vmem:[%s48 + $0x18] sm:$0xff]
    %s53 = scalar_lea.vmem [#allocation5], 96
    %v54 = vld [vmem:[%s53] sm:$0xff]
    %v55 = vld [vmem:[%s53 + $0x8] sm:$0xff]
    %v56 = vld [vmem:[%s53 + $0x10] sm:$0xff]
    %v57 = vld [vmem:[%s53 + $0x18] sm:$0xff]
    %s58 = scalar_lea.vmem [#allocation5], 128
    %v59 = vld [vmem:[%s58] sm:$0xff]
    %v60 = vld [vmem:[%s58 + $0x8] sm:$0xff]
    %v61 = vld [vmem:[%s58 + $0x10] sm:$0xff]
    %v62 = vld [vmem:[%s58 + $0x18] sm:$0xff]
    %s63 = scalar_lea.vmem [#allocation5], 160
    %v64 = vld [vmem:[%s63] sm:$0xff]
    %v65 = vld [vmem:[%s63 + $0x8] sm:$0xff]
    %v66 = vld [vmem:[%s63 + $0x10] sm:$0xff]
    %v67 = vld [vmem:[%s63 + $0x18] sm:$0xff]
    %s68 = scalar_lea.vmem [#allocation5], 192
    %v69 = vld [vmem:[%s68] sm:$0xff]
    %v70 = vld [vmem:[%s68 + $0x8] sm:$0xff]
    %v71 = vld [vmem:[%s68 + $0x10] sm:$0xff]
    %v72 = vld [vmem:[%s68 + $0x18] sm:$0xff]
    %s73 = scalar_lea.vmem [#allocation5], 224
    %v74 = vld [vmem:[%s73] sm:$0x1]
    %76 = vset.pattern.permute.xlu0 0
    %77 = vperm.xlu0 %76, %v39
    %v78 = vpop.permute.xlu0 %77
    %81 = vset.pattern.permute.xlu0 0
    %82 = vperm.xlu0 %81, %v40
    %v83 = vpop.permute.xlu0 %82
    %86 = vset.pattern.permute.xlu0 0
    %87 = vperm.xlu0 %86, %v41
    %v88 = vpop.permute.xlu0 %87
    %91 = vset.pattern.permute.xlu0 0
    %92 = vperm.xlu0 %91, %v42
    %v93 = vpop.permute.xlu0 %92
    %v96 = vlaneseq
    %v97 = vshrl.u32 %v96, 7
    %v98 = vsub.s32 0, %v97
    %v99 = vrot.slane %v38, %v98
    %v101 = vmul.f32 %v78, %v99
    %v102 = vmul.f32 %v83, %v99
    %v103 = vmul.f32 %v88, %v99
    %v104 = vmul.f32 %v93, %v99
    %106 = vset.pattern.permute.xlu0 0
    %107 = vperm.xlu0 %106, %v44
    %v108 = vpop.permute.xlu0 %107
    %111 = vset.pattern.permute.xlu0 0
    %112 = vperm.xlu0 %111, %v45
    %v113 = vpop.permute.xlu0 %112
    %116 = vset.pattern.permute.xlu0 0
    %117 = vperm.xlu0 %116, %v46
    %v118 = vpop.permute.xlu0 %117
    %121 = vset.pattern.permute.xlu0 0
    %122 = vperm.xlu0 %121, %v47
    %v123 = vpop.permute.xlu0 %122
    %v125 = vadd.f32 %v101, %v108
    %v126 = vadd.f32 %v102, %v113
    %v127 = vadd.f32 %v103, %v118
    %v128 = vadd.f32 %v104, %v123
    %v129 = vmax.f32 %v125, 0.0
    %v130 = vmax.f32 %v126, 0.0
    %v131 = vmax.f32 %v127, 0.0
    %v132 = vmax.f32 %v128, 0.0
    %134 = vset.pattern.permute.xlu0 0
    %135 = vperm.xlu0 %134, %v54
    %v136 = vpop.permute.xlu0 %135
    %139 = vset.pattern.permute.xlu0 0
    %140 = vperm.xlu0 %139, %v55
    %v141 = vpop.permute.xlu0 %140
    %144 = vset.pattern.permute.xlu0 0
    %145 = vperm.xlu0 %144, %v56
    %v146 = vpop.permute.xlu0 %145
    %149 = vset.pattern.permute.xlu0 0
    %150 = vperm.xlu0 %149, %v57
    %v151 = vpop.permute.xlu0 %150
    %vm153 = vcmask 261120
    %v155 = vsel %vm153, %v49, 0
    %v158 = vsel %vm153, %v50, 0
    %v161 = vsel %vm153, %v51, 0
    %v164 = vsel %vm153, %v52, 0
    %166 = vmatprep.subr.mxu0 0.0
    %167 = vmatpush1.msra.mxu0 0.0
    %168 = vmatprep.subr.mxu0 0.0
    %169 = vmatpush1.msra.mxu0 0.0
    %170 = vmatprep.subr.mxu0 0.0
    %171 = vmatpush1.msra.mxu0 0.0
    %172 = vmatprep.subr.mxu0 0.0
    %173 = vmatpush1.msra.mxu0 0.0
    %174 = vmatprep.subr.mxu0 0.0
    %175 = vmatpush1.msra.mxu0 0.0
    %176 = vmatprep.subr.mxu0 0.0
    %177 = vmatpush1.msra.mxu0 0.0
    %178 = vmatprep.subr.mxu0 0.0
    %179 = vmatpush1.msra.mxu0 0.0
    %180 = vmatprep.subr.mxu0 0.0
    %181 = vmatpush1.msra.mxu0 0.0
    %182 = vmatprep.subr.mxu0 0.0
    %183 = vmatpush1.msra.mxu0 0.0
    %184 = vmatprep.subr.mxu0 0.0
    %185 = vmatpush1.msra.mxu0 0.0
    %186 = vmatprep.subr.mxu0 0.0
    %187 = vmatpush1.msra.mxu0 0.0
    %188 = vmatprep.subr.mxu0 0.0
    %189 = vmatpush1.msra.mxu0 0.0
    %190 = vmatprep.subr.mxu0 0.0
    %191 = vmatpush1.msra.mxu0 %v132
    %192 = vmatprep.subr.mxu0 0.0
    %193 = vmatpush1.msra.mxu0 %v131
    %194 = vmatprep.subr.mxu0 0.0
    %195 = vmatpush1.msra.mxu0 %v130
    %196 = vmatprep.subr.mxu0 0.0
    %197 = vmatpush1.msra.mxu0 %v129
    %198 = vmatprep.subr.mxu0 0.0
    %199 = vmatpush2.msra.mxu0 0.0
    %200 = vmatprep.subr.mxu0 0.0
    %201 = vmatpush2.msra.mxu0 0.0
    %202 = vmatprep.subr.mxu0 0.0
    %203 = vmatpush2.msra.mxu0 0.0
    %204 = vmatprep.subr.mxu0 0.0
    %205 = vmatpush2.msra.mxu0 0.0
    %206 = vmatprep.subr.mxu0 0.0
    %207 = vmatpush2.msra.mxu0 0.0
    %208 = vmatprep.subr.mxu0 0.0
    %209 = vmatpush2.msra.mxu0 0.0
    %210 = vmatprep.subr.mxu0 0.0
    %211 = vmatpush2.msra.mxu0 0.0
    %212 = vmatprep.subr.mxu0 0.0
    %213 = vmatpush2.msra.mxu0 0.0
    %214 = vmatprep.subr.mxu0 0.0
    %215 = vmatpush2.msra.mxu0 0.0
    %216 = vmatprep.subr.mxu0 0.0
    %217 = vmatpush2.msra.mxu0 0.0
    %218 = vmatprep.subr.mxu0 0.0
    %219 = vmatpush2.msra.mxu0 0.0
    %220 = vmatprep.subr.mxu0 0.0
    %221 = vmatpush2.msra.mxu0 0.0
    %222 = vmatprep.subr.mxu0 0.0
    %223 = vmatpush2.msra.mxu0 0.0
    %224 = vmatprep.subr.mxu0 0.0
    %225 = vmatpush2.msra.mxu0 0.0
    %226 = vmatprep.subr.mxu0 0.0
    %227 = vmatpush2.msra.mxu0 0.0
    %228 = vmatprep.subr.mxu0 0.0
    %229 = vmatpush2.msra.mxu0 0.0
    %230 = vmatprep.mubr.f32.mxu0 0.0
    %231 = vmatmul.mubr.f32.gmra.mxu0 %v155
    %v232 = vpop.f32.mrf.mxu0
    %v233 = vadd.f32 %v136, %v232
    %v234 = vpop.f32.mrf.mxu0
    %235 = vmatprep.mubr.f32.mxu0 0.0
    %236 = vmatmul.mubr.f32.gmra.mxu0 %v158
    %v237 = vpop.f32.mrf.mxu0
    %v238 = vadd.f32 %v141, %v237
    %v239 = vpop.f32.mrf.mxu0
    %240 = vmatprep.mubr.f32.mxu0 0.0
    %241 = vmatmul.mubr.f32.gmra.mxu0 %v161
    %v242 = vpop.f32.mrf.mxu0
    %v243 = vadd.f32 %v146, %v242
    %v244 = vpop.f32.mrf.mxu0
    %245 = vmatprep.mubr.f32.mxu0 0.0
    %246 = vmatmul.mubr.f32.gmra.mxu0 %v164
    %v247 = vpop.f32.mrf.mxu0
    %v248 = vadd.f32 %v151, %v247
    %v249 = vpop.f32.mrf.mxu0
    %250 = vdwg.mxu0
    %v251 = vmax.f32 %v233, 0.0
    %v252 = vmax.f32 %v238, 0.0
    %v253 = vmax.f32 %v243, 0.0
    %v254 = vmax.f32 %v248, 0.0
    %256 = vset.pattern.permute.xlu0 0
    %257 = vperm.xlu0 %256, %v64
    %v258 = vpop.permute.xlu0 %257
    %261 = vset.pattern.permute.xlu0 0
    %262 = vperm.xlu0 %261, %v65
    %v263 = vpop.permute.xlu0 %262
    %266 = vset.pattern.permute.xlu0 0
    %267 = vperm.xlu0 %266, %v66
    %v268 = vpop.permute.xlu0 %267
    %271 = vset.pattern.permute.xlu0 0
    %272 = vperm.xlu0 %271, %v67
    %v273 = vpop.permute.xlu0 %272
    %v276 = vsel %vm153, %v59, 0
    %v279 = vsel %vm153, %v60, 0
    %v282 = vsel %vm153, %v61, 0
    %v285 = vsel %vm153, %v62, 0
    %287 = vmatprep.subr.mxu0 0.0
    %288 = vmatpush1.msra.mxu0 0.0
    %289 = vmatprep.subr.mxu0 0.0
    %290 = vmatpush1.msra.mxu0 0.0
    %291 = vmatprep.subr.mxu0 0.0
    %292 = vmatpush1.msra.mxu0 0.0
    %293 = vmatprep.subr.mxu0 0.0
    %294 = vmatpush1.msra.mxu0 0.0
    %295 = vmatprep.subr.mxu0 0.0
    %296 = vmatpush1.msra.mxu0 0.0
    %297 = vmatprep.subr.mxu0 0.0
    %298 = vmatpush1.msra.mxu0 0.0
    %299 = vmatprep.subr.mxu0 0.0
    %300 = vmatpush1.msra.mxu0 0.0
    %301 = vmatprep.subr.mxu0 0.0
    %302 = vmatpush1.msra.mxu0 0.0
    %303 = vmatprep.subr.mxu0 0.0
    %304 = vmatpush1.msra.mxu0 0.0
    %305 = vmatprep.subr.mxu0 0.0
    %306 = vmatpush1.msra.mxu0 0.0
    %307 = vmatprep.subr.mxu0 0.0
    %308 = vmatpush1.msra.mxu0 0.0
    %309 = vmatprep.subr.mxu0 0.0
    %310 = vmatpush1.msra.mxu0 0.0
    %311 = vmatprep.subr.mxu0 0.0
    %312 = vmatpush1.msra.mxu0 %v254
    %313 = vmatprep.subr.mxu0 0.0
    %314 = vmatpush1.msra.mxu0 %v253
    %315 = vmatprep.subr.mxu0 0.0
    %316 = vmatpush1.msra.mxu0 %v252
    %317 = vmatprep.subr.mxu0 0.0
    %318 = vmatpush1.msra.mxu0 %v251
    %319 = vmatprep.subr.mxu0 0.0
    %320 = vmatpush2.msra.mxu0 0.0
    %321 = vmatprep.subr.mxu0 0.0
    %322 = vmatpush2.msra.mxu0 0.0
    %323 = vmatprep.subr.mxu0 0.0
    %324 = vmatpush2.msra.mxu0 0.0
    %325 = vmatprep.subr.mxu0 0.0
    %326 = vmatpush2.msra.mxu0 0.0
    %327 = vmatprep.subr.mxu0 0.0
    %328 = vmatpush2.msra.mxu0 0.0
    %329 = vmatprep.subr.mxu0 0.0
    %330 = vmatpush2.msra.mxu0 0.0
    %331 = vmatprep.subr.mxu0 0.0
    %332 = vmatpush2.msra.mxu0 0.0
    %333 = vmatprep.subr.mxu0 0.0
    %334 = vmatpush2.msra.mxu0 0.0
    %335 = vmatprep.subr.mxu0 0.0
    %336 = vmatpush2.msra.mxu0 0.0
    %337 = vmatprep.subr.mxu0 0.0
    %338 = vmatpush2.msra.mxu0 0.0
    %339 = vmatprep.subr.mxu0 0.0
    %340 = vmatpush2.msra.mxu0 0.0
    %341 = vmatprep.subr.mxu0 0.0
    %342 = vmatpush2.msra.mxu0 0.0
    %343 = vmatprep.subr.mxu0 0.0
    %344 = vmatpush2.msra.mxu0 0.0
    %345 = vmatprep.subr.mxu0 0.0
    %346 = vmatpush2.msra.mxu0 0.0
    %347 = vmatprep.subr.mxu0 0.0
    %348 = vmatpush2.msra.mxu0 0.0
    %349 = vmatprep.subr.mxu0 0.0
    %350 = vmatpush2.msra.mxu0 0.0
    %351 = vmatprep.mubr.f32.mxu0 0.0
    %352 = vmatmul.mubr.f32.gmra.mxu0 %v276
    %v353 = vpop.f32.mrf.mxu0
    %v354 = vadd.f32 %v258, %v353
    %v355 = vpop.f32.mrf.mxu0
    %356 = vmatprep.mubr.f32.mxu0 0.0
    %357 = vmatmul.mubr.f32.gmra.mxu0 %v279
    %v358 = vpop.f32.mrf.mxu0
    %v359 = vadd.f32 %v263, %v358
    %v360 = vpop.f32.mrf.mxu0
    %361 = vmatprep.mubr.f32.mxu0 0.0
    %362 = vmatmul.mubr.f32.gmra.mxu0 %v282
    %v363 = vpop.f32.mrf.mxu0
    %v364 = vadd.f32 %v268, %v363
    %v365 = vpop.f32.mrf.mxu0
    %366 = vmatprep.mubr.f32.mxu0 0.0
    %367 = vmatmul.mubr.f32.gmra.mxu0 %v285
    %v368 = vpop.f32.mrf.mxu0
    %v369 = vadd.f32 %v273, %v368
    %v370 = vpop.f32.mrf.mxu0
    %371 = vdwg.mxu0
    %v372 = vmax.f32 %v354, 0.0
    %v373 = vmax.f32 %v359, 0.0
    %v374 = vmax.f32 %v364, 0.0
    %v375 = vmax.f32 %v369, 0.0
    %377 = vset.pattern.permute.xlu0 0
    %378 = vperm.xlu0 %377, %v69
    %v379 = vpop.permute.xlu0 %378
    %382 = vset.pattern.permute.xlu0 0
    %383 = vperm.xlu0 %382, %v70
    %v384 = vpop.permute.xlu0 %383
    %387 = vset.pattern.permute.xlu0 0
    %388 = vperm.xlu0 %387, %v71
    %v389 = vpop.permute.xlu0 %388
    %392 = vset.pattern.permute.xlu0 0
    %393 = vperm.xlu0 %392, %v72
    %v394 = vpop.permute.xlu0 %393
    %v396 = vmul.f32 %v379, %v372
    %v397 = vmul.f32 %v384, %v373
    %v398 = vmul.f32 %v389, %v374
    %v399 = vmul.f32 %v394, %v375
    %v400 = vadd.f32 %v396, %v397
    %v401 = vadd.f32 %v400, %v398
    %v402 = vadd.f32 %v401, %v399
    %v403 = vrot.slane %v402, 4
    %v404 = vadd.f32 %v402, %v403
    %v405 = vrot.slane %v404, 2
    %v406 = vadd.f32 %v404, %v405
    %v407 = vrot.slane %v406, 1
    %v408 = vadd.f32 %v406, %v407
    %410 = vset.pattern.permute.xlu0 0
    %411 = vperm.xlu0 %410, %v74
    %v412 = vpop.permute.xlu0 %411
    %v414 = vadd.f32 %v408, %v412
    %415 = vst [vmem:[#allocation7] sm:$0x1] %v414
    // Predicated region
    $region18: #{tpu_custom_call.1} parent=1 // pred_check
      _
    $region19: #{tpu_custom_call.1} parent=1 // pred_check_branch
      %417 = sbr.rel (0) target = $region21
    $region20: #{tpu_custom_call.1} parent=1 // pred_region
      %s419 = ssub.s32 16, 16
      %420 = vsyncadd [#allocation4], %s419
      %s422 = sshll.u32 [#allocation7], 4
      %s423 = int_to_ptr.vmem [resolvable:$true] %s422
      %425 = dma.vmem_to_hbm [thread:$0]  %s423, 16, %s2, [#allocation4]
    $region21: #{tpu_custom_call.1} parent=1 // pred_fallthru
      _
    // Predicated region
    $region22: #{tpu_custom_call.1} parent=1 // pred_check
      _
    $region23: #{tpu_custom_call.1} parent=1 // pred_check_branch
      %427 = sbr.rel (0) target = $region25
    $region24: #{tpu_custom_call.1} parent=1 // pred_region
      %428 = dma.done [#allocation4], 16
    $region25: #{tpu_custom_call.1} parent=1 // pred_fallthru
      _
    %429 = vsyncpa [#allocation3], 1
    %430 = vsyncpa [#allocation6], 1
    %431 = vsyncpa [#allocation4], 1

</llo_original>
